<compile_context>
chip_gen: v6e
topology: v6e:2x2x1
jax: 0.10.0
libtpu: 0.0.40
codegen_flags: <defaults>
</compile_context>

<pallas_src>
import functools

import jax
import jax.numpy as jnp
from jax.experimental import pallas as pl
from jax.experimental.pallas import tpu as pltpu

ALPHA = 0.25
GAMMA = 2.0  # exactly 2 -> implemented as a square


def _focal_rowsum_kernel(logit_ref, labels_ref, rowsum_ref, *, approx_recip):
    x = logit_ref[...].astype(jnp.float32)                          # [TB, C]
    t = jnp.clip(labels_ref[...].astype(jnp.float32), 0.01, 0.99)   # [TB, C]

    # EUP work: exp, log1p, one reciprocal per element.
    e = jnp.exp(-jnp.abs(x))                              # exp(-|x|) in (0, 1]
    p_hi = pl.reciprocal(1.0 + e, approx=approx_recip)    # sigmoid(|x|)  = max(p, 1-p)
    p_lo = e * p_hi                                       # sigmoid(-|x|) = min(p, 1-p)
    pos = x >= 0.0
    p = jnp.where(pos, p_hi, p_lo)                        # sigmoid(x)
    one_m_p = jnp.where(pos, p_lo, p_hi)                  # 1 - sigmoid(x), no subtract

    bce = jnp.maximum(x, 0.0) - x * t + jnp.log1p(e)
    focal = (ALPHA * t * (one_m_p * one_m_p) + (1.0 - t) * (p * p)) * bce

    # Reduce over C first (cross-lane XLU reduce; VALU slot untouched).  Row
    # weighting / masking / normalization happen outside the kernel.
    rowsum_ref[...] = jnp.sum(focal, axis=-1, keepdims=True)        # [TB, 1]


def _choose_tile_b(batch, channels, itemsize, *,
                   target_block_bytes=2 << 20, min_grid=2):
    """Batch tile: ~target bytes per input block, multiple of 8, >= min_grid tiles."""
    if batch <= 8:
        return batch                                   # full-dim block (always legal)
    row_bytes = max(1, channels * itemsize)
    tb_bytes = max(8, (target_block_bytes // row_bytes) // 8 * 8)
    tb_grid = 8 * pl.cdiv(batch, 8 * min_grid)         # keep >= min_grid tiles (v7x: 2 TCs)
    return max(8, min(tb_bytes, tb_grid))


@functools.partial(jax.jit, static_argnames=("approx_recip",))
def bce_focal_1way_loss(logit, labels, weight, *, approx_recip=True):
    """logit: [B, C], labels: [B, C], weight: [B]  ->  scalar f32 loss."""
    B, C = logit.shape
    itemsize = max(logit.dtype.itemsize, labels.dtype.itemsize)
    TB = _choose_tile_b(B, C, itemsize)
    grid = pl.cdiv(B, TB)

    # Explicit VMEM budget: double-buffered input blocks + tiny (TB,1) output
    # blocks + slack; never below the 32 MiB default, never above 48 MiB (safe
    # headroom under v7x's 64 MiB physical VMEM).
    in_block_bytes = TB * C * (logit.dtype.itemsize + labels.dtype.itemsize)
    vmem_limit = int(min(48 << 20,
                         max(32 << 20, 2 * in_block_bytes + 2 * TB * 512 + (4 << 20))))

    row_sums = pl.pallas_call(
        functools.partial(_focal_rowsum_kernel, approx_recip=approx_recip),
        out_shape=jax.ShapeDtypeStruct((B, 1), jnp.float32),
        grid=(grid,),
        in_specs=[
            pl.BlockSpec((TB, C), lambda i: (i, 0)),
            pl.BlockSpec((TB, C), lambda i: (i, 0)),
        ],
        out_specs=pl.BlockSpec((TB, 1), lambda i: (i, 0)),
        compiler_params=pltpu.CompilerParams(
            dimension_semantics=("parallel",),
            vmem_limit_bytes=vmem_limit),
    )(logit, labels)

    # Tiny wrapper epilogue: per-row weight, final sum, normalization by sum(w).
    w = weight.astype(jnp.float32)
    return jnp.dot(row_sums[:, 0], w) / jnp.sum(w)


def _reference(logit, labels, weight):
    """Pure-JAX reference (mirrors the PyTorch module)."""
    x = logit.astype(jnp.float32)
    t = jnp.clip(labels.astype(jnp.float32), 0.01, 0.99)
    bce = jnp.maximum(x, 0.0) - x * t + jnp.log1p(jnp.exp(-jnp.abs(x)))
    p = jax.nn.sigmoid(x)
    loss = t * ALPHA * (1.0 - p) ** GAMMA * bce + (1.0 - t) * p ** GAMMA * bce
    w = weight.astype(jnp.float32)
    return jnp.sum(jnp.sum(loss, axis=1) * w / jnp.sum(w))


if __name__ == "__main__":
    # Test 1: single tile (B=8, C=128), exact reciprocal -> tight tolerance.
    k1, k2, k3 = jax.random.split(jax.random.PRNGKey(0), 3)
    B, C = 8, 128
    logit = jax.random.normal(k1, (B, C), dtype=jnp.float32) * 2.0
    labels = (jax.random.uniform(k2, (B, C)) > 0.5).astype(jnp.float32)
    weight = jax.random.uniform(k3, (B,), minval=0.1, maxval=1.0).astype(jnp.float32)

    out = jax.block_until_ready(
        bce_focal_1way_loss(logit, labels, weight, approx_recip=False))
    ref = _reference(logit, labels, weight)
    assert jnp.allclose(out, ref, rtol=1e-5, atol=1e-5), (out, ref)

    # Test 2: multi-tile grid with a partial last tile (B=20 -> TB=16, grid=2),
    # default approx reciprocal (EUP vrcp, ~12-bit) -> slightly looser tolerance.
    k4, k5, k6 = jax.random.split(jax.random.PRNGKey(1), 3)
    B2, C2 = 20, 256
    logit2 = jax.random.normal(k4, (B2, C2), dtype=jnp.float32) * 2.0
    labels2 = (jax.random.uniform(k5, (B2, C2)) > 0.5).astype(jnp.float32)
    weight2 = jax.random.uniform(k6, (B2,), minval=0.1, maxval=1.0).astype(jnp.float32)

    out2 = jax.block_until_ready(bce_focal_1way_loss(logit2, labels2, weight2))
    ref2 = _reference(logit2, labels2, weight2)
    assert jnp.allclose(out2, ref2, rtol=2e-3, atol=2e-3), (out2, ref2)

    # Test 3: bf16 logits/labels (halved HBM bytes, cast to f32 in-kernel),
    # multi-tile grid (B=24 -> TB=16, grid=2), default approx reciprocal.
    k7, k8, k9 = jax.random.split(jax.random.PRNGKey(2), 3)
    B3, C3 = 24, 512
    logit3 = (jax.random.normal(k7, (B3, C3), dtype=jnp.float32) * 2.0).astype(jnp.bfloat16)
    labels3 = (jax.random.uniform(k8, (B3, C3)) > 0.5).astype(jnp.bfloat16)
    weight3 = jax.random.uniform(k9, (B3,), minval=0.1, maxval=1.0).astype(jnp.float32)

    out3 = jax.block_until_ready(bce_focal_1way_loss(logit3, labels3, weight3))
    ref3 = _reference(logit3, labels3, weight3)
    assert jnp.allclose(out3, ref3, rtol=2e-3, atol=2e-3), (out3, ref3)

    print("KERNEL_OK")
</pallas_src>

<mosaic_0001>
module attributes {stable_mosaic.version = 11 : i64} {
  func.func @_focal_rowsum_kernel(%arg0: i32, %arg1: memref<8x128xf32, #tpu.memory_space<vmem>>, %arg2: memref<8x128xf32, #tpu.memory_space<vmem>>, %arg3: memref<8x1xf32, #tpu.memory_space<vmem>>) attributes {dimension_semantics = [#tpu.dimension_semantics<parallel>], iteration_bounds = array<i64: 1>, scalar_prefetch = 0 : i64, scratch_operands = 0 : i64, tpu.core_type = #tpu.core_type<tc>, window_params = [{transform_indices = @transform_0, window_bounds = array<i64: 8, 128>}, {transform_indices = @transform_1, window_bounds = array<i64: 8, 128>}, {transform_indices = @transform_2, window_bounds = array<i64: 8, 1>}]} {
    %c0 = arith.constant 0 : index
    %c0_0 = arith.constant 0 : index
    %0 = vector.load %arg1[%c0, %c0_0] : memref<8x128xf32, #tpu.memory_space<vmem>>, vector<8x128xf32>
    %c0_1 = arith.constant 0 : index
    %c0_2 = arith.constant 0 : index
    %1 = vector.load %arg2[%c0_1, %c0_2] : memref<8x128xf32, #tpu.memory_space<vmem>>, vector<8x128xf32>
    %cst = arith.constant 0.00999999977 : f32
    %cst_3 = arith.constant 9.900000e-01 : f32
    %2 = vector.broadcast %cst : f32 to vector<8x128xf32>
    %3 = arith.maximumf %2, %1 : vector<8x128xf32>
    %4 = vector.broadcast %cst_3 : f32 to vector<8x128xf32>
    %5 = arith.minimumf %4, %3 : vector<8x128xf32>
    %6 = math.absf %0 : vector<8x128xf32>
    %cst_4 = arith.constant 0.000000e+00 : f32
    %7 = vector.broadcast %cst_4 : f32 to vector<8x128xf32>
    %8 = arith.subf %7, %6 : vector<8x128xf32>
    %9 = math.exp %8 : vector<8x128xf32>
    %cst_5 = arith.constant 1.000000e+00 : f32
    %10 = vector.broadcast %cst_5 : f32 to vector<8x128xf32>
    %11 = arith.addf %10, %9 : vector<8x128xf32>
    %12 = tpu.reciprocal %11 : vector<8x128xf32> -> vector<8x128xf32>
    %13 = arith.mulf %9, %12 : vector<8x128xf32>
    %cst_6 = arith.constant 0.000000e+00 : f32
    %14 = vector.broadcast %cst_6 : f32 to vector<8x128xf32>
    %15 = arith.cmpf oge, %0, %14 : vector<8x128xf32>
    %16 = arith.select %15, %12, %13 : vector<8x128xi1>, vector<8x128xf32>
    %17 = arith.select %15, %13, %12 : vector<8x128xi1>, vector<8x128xf32>
    %cst_7 = arith.constant 0.000000e+00 : f32
    %18 = vector.broadcast %cst_7 : f32 to vector<8x128xf32>
    %19 = arith.maximumf %0, %18 : vector<8x128xf32>
    %20 = arith.mulf %0, %5 : vector<8x128xf32>
    %21 = arith.subf %19, %20 : vector<8x128xf32>
    %22 = math.log1p %9 : vector<8x128xf32>
    %23 = arith.addf %21, %22 : vector<8x128xf32>
    %cst_8 = arith.constant 2.500000e-01 : f32
    %24 = vector.broadcast %cst_8 : f32 to vector<8x128xf32>
    %25 = arith.mulf %24, %5 : vector<8x128xf32>
    %26 = arith.mulf %17, %17 : vector<8x128xf32>
    %27 = arith.mulf %25, %26 : vector<8x128xf32>
    %cst_9 = arith.constant 1.000000e+00 : f32
    %28 = vector.broadcast %cst_9 : f32 to vector<8x128xf32>
    %29 = arith.subf %28, %5 : vector<8x128xf32>
    %30 = arith.mulf %16, %16 : vector<8x128xf32>
    %31 = arith.mulf %29, %30 : vector<8x128xf32>
    %32 = arith.addf %27, %31 : vector<8x128xf32>
    %33 = arith.mulf %32, %23 : vector<8x128xf32>
    %cst_10 = arith.constant dense<0.000000e+00> : vector<8xf32>
    %34 = vector.multi_reduction <add>, %33, %cst_10 [1] : vector<8x128xf32> to vector<8xf32>
    %35 = vector.shape_cast %34 : vector<8xf32> to vector<8x1xf32>
    %c0_11 = arith.constant 0 : index
    %c0_12 = arith.constant 0 : index
    %36 = vector.load %arg3[%c0_11, %c0_12] : memref<8x1xf32, #tpu.memory_space<vmem>>, vector<8x1xf32>
    tpu.vector_store %arg3[%c0_11, %c0_12], %35 {strides = array<i32>} : memref<8x1xf32, #tpu.memory_space<vmem>>, vector<8x1xf32>,
    return
  }
  func.func @transform_0(%arg0: i32) -> (i32, i32) {
    %c0_i32 = arith.constant 0 : i32
    %c0_i32_0 = arith.constant 0 : i32
    return %arg0, %c0_i32 : i32, i32
  }
  func.func @transform_1(%arg0: i32) -> (i32, i32) {
    %c0_i32 = arith.constant 0 : i32
    %c0_i32_0 = arith.constant 0 : i32
    return %arg0, %c0_i32 : i32, i32
  }
  func.func @transform_2(%arg0: i32) -> (i32, i32) {
    %c0_i32 = arith.constant 0 : i32
    %c0_i32_0 = arith.constant 0 : i32
    return %arg0, %c0_i32 : i32, i32
  }
}

</mosaic_0001>

<llo_original>
// kernel: bce_focal_1way_loss.1
$region0: #{bce_focal_1way_loss.1}
  #allocation0 [shape = 'u32[]', space=smem, size = 0x4, offset = 0x4, fixed_abs, tag = 'smem constant byte address 0x4 - core index']
  #allocation1 [shape = 'u32[144,128]{1,0:T(1,128)}', space=vmem, size = 0x12000, scoped, tag = 'internal scratch']
  %s0 = inlined_call_operand.hbm [shape: f32[8,128], index: 0, kind: input, shape index: {}]
  %s1 = inlined_call_operand.hbm [shape: f32[8,128], index: 1, kind: input, shape index: {}]
  %s2 = inlined_call_operand.vmem [shape: f32[8,1], index: 2, kind: output, shape index: {}]
  %s3 = sld [smem:[#allocation0]]
  $region26: #{bce_focal_1way_loss.1} parent=0
    _
  %s5 = ssub.s32 1, %s3
  %s6 = scalar_select 0, %s5, %s3
  $region1: #{bce_focal_1way_loss.1} parent=0
    #allocation2 [shape = 'u8[4096]{0}', space=vmem, size = 0x1000, scoped, tag = 'input window, operand 0, single buffered']
    #allocation3 [shape = 's32[1]{0}', space=sflag, size = 0x4, scoped, tag = 'scoped memory for bce_focal_1way_loss.1']
    #allocation4 [shape = 'u8[4096]{0}', space=vmem, size = 0x1000, scoped, tag = 'input window, operand 1, single buffered']
    #allocation5 [shape = 's32[1]{0}', space=sflag, size = 0x4, scoped, tag = 'scoped memory for bce_focal_1way_loss.1']
    %7 = vsyncpa [#allocation3], 0
    %8 = vsyncpa [#allocation5], 0
    // Predicated region
    $region2: #{bce_focal_1way_loss.1} parent=1 // pred_check
      _
    $region3: #{bce_focal_1way_loss.1} parent=1 // pred_check_branch
      %10 = sbr.rel (0) target = $region5
    $region4: #{bce_focal_1way_loss.1} parent=1 // pred_region
      %s12 = ssub.s32 128, 128
      %13 = vsyncadd [#allocation3], %s12
      %s15 = sshll.u32 [#allocation2], 4
      %s16 = int_to_ptr.vmem [resolvable:$true] %s15
      %18 = dma.hbm_to_vmem [thread:$0]  %s0, 128, %s16, [#allocation3]
    $region5: #{bce_focal_1way_loss.1} parent=1 // pred_fallthru
      _
    // Predicated region
    $region6: #{bce_focal_1way_loss.1} parent=1 // pred_check
      _
    $region7: #{bce_focal_1way_loss.1} parent=1 // pred_check_branch
      %20 = sbr.rel (0) target = $region9
    $region8: #{bce_focal_1way_loss.1} parent=1 // pred_region
      %s22 = ssub.s32 128, 128
      %23 = vsyncadd [#allocation5], %s22
      %s25 = sshll.u32 [#allocation4], 4
      %s26 = int_to_ptr.vmem [resolvable:$true] %s25
      %28 = dma.hbm_to_vmem [thread:$0]  %s1, 128, %s26, [#allocation5]
    $region9: #{bce_focal_1way_loss.1} parent=1 // pred_fallthru
      _
    // Predicated region
    $region10: #{bce_focal_1way_loss.1} parent=1 // pred_check
      _
    $region11: #{bce_focal_1way_loss.1} parent=1 // pred_check_branch
      %30 = sbr.rel (0) target = $region13
    $region12: #{bce_focal_1way_loss.1} parent=1 // pred_region
      %31 = dma.done [#allocation3], 128
    $region13: #{bce_focal_1way_loss.1} parent=1 // pred_fallthru
      _
    // Predicated region
    $region14: #{bce_focal_1way_loss.1} parent=1 // pred_check
      _
    $region15: #{bce_focal_1way_loss.1} parent=1 // pred_check_branch
      %33 = sbr.rel (0) target = $region17
    $region16: #{bce_focal_1way_loss.1} parent=1 // pred_region
      %34 = dma.done [#allocation5], 128
    $region17: #{bce_focal_1way_loss.1} parent=1 // pred_fallthru
      _
    %v35 = vld [vmem:[#allocation2] sm:$0xff]
    %v36 = vld [vmem:[#allocation4] sm:$0xff]
    %v37 = vmax.f32 %v36, 0.01
    %v38 = vmin.f32 %v37, 0.99
    %v39 = vand.u32 2147483647, %v35
    %v40 = vsub.f32 0.0, %v39
    %v41 = vmul.f32 %v40, 1.442695
    %v42 = vpow.pop %v41
    %v43 = vadd.f32 %v42, 1.0
    %v44 = vrcp.pop %v43
    %v45 = vmul.f32 %v42, %v44
    %vm46 = vcmp.ge.f32.partialorder %v35, 0.0
    %v47 = vsel %vm46, %v44, %v45
    %v48 = vsel %vm46, %v45, %v44
    %v49 = vmax.f32 %v35, 0.0
    %v50 = vmul.f32 %v35, %v38
    %v51 = vsub.f32 %v49, %v50
    %v52 = vadd.f32 %v42, 1.0
    %v53 = vlog2.pop %v52
    %v54 = vmul.f32 %v53, 0.6931472
    %v55 = vmul.f32 -0.5, %v42
    %v56 = vadd.f32 %v55, 1.0
    %v57 = vmul.f32 %v56, %v42
    %v58 = vand.u32 2147483647, %v42
    %vm59 = vcmp.lt.f32.partialorder %v58, 0.0004427343
    %v60 = vsel %vm59, %v57, %v54
    %v61 = vadd.f32 %v51, %v60
    %v62 = vmul.f32 %v38, 0.25
    %v63 = vmul.f32 %v48, %v48
    %v64 = vmul.f32 %v62, %v63
    %v65 = vsub.f32 1.0, %v38
    %v66 = vmul.f32 %v47, %v47
    %v67 = vmul.f32 %v65, %v66
    %v68 = vadd.f32 %v64, %v67
    %v69 = vmul.f32 %v68, %v61
    %70 = vadd.xlane.f32.xlu0 %v69
    %v71 = vpop.xlane.xlu0 %70
    %vm72 = vcmask 7168
    %73 = vst.msk [vmem:[%s2] sm:$0xff] %vm72, %v71
    // Predicated region
    $region18: #{bce_focal_1way_loss.1} parent=1 // pred_check
      _
    $region19: #{bce_focal_1way_loss.1} parent=1 // pred_check_branch
      %75 = sbr.rel (0) target = $region21
    $region20: #{bce_focal_1way_loss.1} parent=1 // pred_region
      _
    $region21: #{bce_focal_1way_loss.1} parent=1 // pred_fallthru
      _
    // Predicated region
    $region22: #{bce_focal_1way_loss.1} parent=1 // pred_check
      _
    $region23: #{bce_focal_1way_loss.1} parent=1 // pred_check_branch
      %77 = sbr.rel (0) target = $region25
    $region24: #{bce_focal_1way_loss.1} parent=1 // pred_region
      _
    $region25: #{bce_focal_1way_loss.1} parent=1 // pred_fallthru
      _
    %78 = vsyncpa [#allocation3], 1
    %79 = vsyncpa [#allocation5], 1

</llo_original>
